<compile_context>
chip_gen: v7x
topology: tpu7x:2x2x1
jax: 0.10.0
libtpu: 0.0.40
codegen_flags: <defaults>
</compile_context>

<pallas_src>
import functools
import math

import jax
import jax.numpy as jnp
from jax import lax
from jax.experimental import pallas as pl
from jax.experimental.pallas import tpu as pltpu

LEAKY_SLOPE = 0.2
BN_EPS = 1e-5
LANE = 128


def _round_up(x, m):
    return ((x + m - 1) // m) * m


def _keep_mask_bits(seed_scalar, layer_scalar, shape):
    """uint32 hash of (seed, layer, element index) -- murmur-style finalizer.

    Pure VPU integer ops (mul/add/xor/shift), lowerable on TPU and in
    interpret mode; gives a distinct stream per layer / per seed.
    """
    rows = lax.broadcasted_iota(jnp.uint32, shape, 0)
    cols = lax.broadcasted_iota(jnp.uint32, shape, 1)
    idx = rows * jnp.uint32(shape[1]) + cols
    seed_u = lax.convert_element_type(seed_scalar, jnp.uint32)
    layer_u = lax.convert_element_type(layer_scalar, jnp.uint32)
    h = idx * jnp.uint32(0x9E3779B1)
    h = h + seed_u * jnp.uint32(0x85EBCA77)
    h = h + layer_u * jnp.uint32(0xC2B2AE3D)
    h = h ^ (h >> 16)
    h = h * jnp.uint32(0x7FEB352D)
    h = h ^ (h >> 15)
    h = h * jnp.uint32(0x846CA68B)
    h = h ^ (h >> 16)
    return h


def _encoder_kernel(seed_ref, x_ref, w_ref, b_ref, g_ref, beta_ref, o_ref,
                    act_ref, *, num_layers, dropout_p, keep_threshold,
                    mxu_dtype):
    l = pl.program_id(0)

    # Layer 0 consumes the (padded) input; later layers consume the previous
    # layer's activation, kept resident in VMEM scratch across grid steps.
    @pl.when(l == 0)
    def _():
        act_ref[...] = x_ref[...]

    act = act_ref[...]                                        # (N, Dmax) f32
    w = w_ref[0]                                              # (Dmax, Dmax)
    # ---- Linear (MXU): activation cast to the MXU dtype, f32 accumulation.
    y = jnp.dot(act.astype(mxu_dtype), w,
                preferred_element_type=jnp.float32)

    inv_n = 1.0 / act.shape[0]

    @pl.when(l < num_layers - 1)
    def _():
        # ---- BatchNorm1d (training mode: batch stats, biased variance),
        #      affine folded into one scale/shift.  The Linear bias of hidden
        #      layers is omitted: it is exactly cancelled by the mean
        #      subtraction.
        mean = jnp.sum(y, axis=0, keepdims=True) * inv_n          # (1, Dmax)
        var = jnp.maximum(
            jnp.sum(y * y, axis=0, keepdims=True) * inv_n - mean * mean, 0.0)
        scale = g_ref[0] * lax.rsqrt(var + BN_EPS)                # (1, Dmax)
        shift = beta_ref[0] - mean * scale
        z = y * scale + shift
        # ---- LeakyReLU(0.2)
        z = jnp.maximum(z, LEAKY_SLOPE * z)
        # ---- Dropout(p) (training mode): integer threshold compare.
        if dropout_p > 0.0:
            bits = _keep_mask_bits(seed_ref[0], l, z.shape)
            keep = bits >= jnp.uint32(keep_threshold)
            z = jnp.where(keep, z * (1.0 / (1.0 - dropout_p)), 0.0)
        act_ref[...] = z

    @pl.when(l == num_layers - 1)
    def _():
        # Final projection: plain Linear (bias, no BN / activation / dropout).
        o_ref[...] = y + b_ref[0]


def pack_encoder_params(layer_params, final_w, final_b, *,
                        mxu_dtype=jnp.float32):
    """Pack per-layer params into padded, stacked, PRE-TRANSPOSED arrays.

    layer_params: list of (weight (out,in), gamma (out,), beta (out,)) for the
      hidden LinearBlocks (Linear bias intentionally omitted -- cancelled by
      the training-mode BatchNorm).
    final_w: (latent_dim, last_hidden); final_b: (latent_dim,)

    Done ONCE at setup time; the forward wrapper does no transposes/pads.
    """
    all_dims = [final_w.shape[0], final_w.shape[1]]
    for (w, _, _) in layer_params:
        all_dims += [w.shape[0], w.shape[1]]
    d_max = max(_round_up(max(all_dims), LANE), LANE)

    num_layers = len(layer_params) + 1
    w_stack = jnp.zeros((num_layers, d_max, d_max), jnp.float32)
    b_stack = jnp.zeros((num_layers, 1, d_max), jnp.float32)
    g_stack = jnp.zeros((num_layers, 1, d_max), jnp.float32)
    beta_stack = jnp.zeros((num_layers, 1, d_max), jnp.float32)

    for i, (w, g, bt) in enumerate(layer_params):
        out_d, in_d = w.shape
        w_stack = w_stack.at[i, :in_d, :out_d].set(
            jnp.asarray(w, jnp.float32).T)
        g_stack = g_stack.at[i, 0, :out_d].set(jnp.asarray(g, jnp.float32))
        beta_stack = beta_stack.at[i, 0, :out_d].set(
            jnp.asarray(bt, jnp.float32))

    out_d, in_d = final_w.shape
    w_stack = w_stack.at[num_layers - 1, :in_d, :out_d].set(
        jnp.asarray(final_w, jnp.float32).T)
    b_stack = b_stack.at[num_layers - 1, 0, :out_d].set(
        jnp.asarray(final_b, jnp.float32))

    return dict(
        w_stack=w_stack.astype(mxu_dtype),   # bf16 copy made once, not per call
        b_stack=b_stack, g_stack=g_stack, beta_stack=beta_stack,
        d_max=d_max, num_layers=num_layers,
        input_dim=layer_params[0][0].shape[1] if layer_params else final_w.shape[1],
        latent_dim=final_w.shape[0],
    )


def encoder_forward(packed, x, seed, *, dropout_p=0.1):
    """x: (N, input_dim) -> (N, latent_dim). Training-mode forward."""
    n, in_dim = x.shape
    d_max = packed["d_max"]
    num_layers = packed["num_layers"]
    assert in_dim == packed["input_dim"]

    x_pad = jnp.zeros((n, d_max), jnp.float32).at[:, :in_dim].set(
        x.astype(jnp.float32))
    seed_arr = jnp.asarray([seed], jnp.int32)
    keep_threshold = min(int(round(float(dropout_p) * 2.0 ** 32)), 2 ** 32 - 1)

    kernel = functools.partial(
        _encoder_kernel,
        num_layers=num_layers,
        dropout_p=float(dropout_p),
        keep_threshold=keep_threshold,
        mxu_dtype=packed["w_stack"].dtype,
    )

    grid_spec = pltpu.PrefetchScalarGridSpec(
        num_scalar_prefetch=1,            # seed -> SMEM
        grid=(num_layers,),               # sequential layer axis
        in_specs=[
            pl.BlockSpec((n, d_max), lambda l, seed: (0, 0)),            # x (resident)
            pl.BlockSpec((1, d_max, d_max), lambda l, seed: (l, 0, 0)),  # W^T per layer
            pl.BlockSpec((1, 1, d_max), lambda l, seed: (l, 0, 0)),      # bias per layer
            pl.BlockSpec((1, 1, d_max), lambda l, seed: (l, 0, 0)),      # gamma per layer
            pl.BlockSpec((1, 1, d_max), lambda l, seed: (l, 0, 0)),      # beta per layer
        ],
        out_specs=pl.BlockSpec((n, d_max), lambda l, seed: (0, 0)),
        scratch_shapes=[pltpu.VMEM((n, d_max), jnp.float32)],            # resident activation
    )

    out_pad = pl.pallas_call(
        kernel,
        out_shape=jax.ShapeDtypeStruct((n, d_max), jnp.float32),
        grid_spec=grid_spec,
        compiler_params=pltpu.CompilerParams(
            dimension_semantics=("arbitrary",),
            vmem_limit_bytes=32 * 1024 * 1024,
        ),
    )(seed_arr, x_pad, packed["w_stack"], packed["b_stack"],
      packed["g_stack"], packed["beta_stack"])

    return out_pad[:, :packed["latent_dim"]]


def _encoder_reference_no_dropout(x, layer_params_full, final_w, final_b):
    """Pure-JAX PyTorch-semantics forward (dropout disabled), incl. hidden biases."""
    h = x
    hp = jax.lax.Precision.HIGHEST
    for (w, b, g, bt) in layer_params_full:
        y = jnp.dot(h, w.T, precision=hp) + b[None, :]
        mean = jnp.mean(y, axis=0, keepdims=True)
        var = jnp.mean((y - mean) ** 2, axis=0, keepdims=True)
        y = (y - mean) / jnp.sqrt(var + BN_EPS)
        y = y * g[None, :] + bt[None, :]
        h = jnp.where(y >= 0.0, y, LEAKY_SLOPE * y)
    return jnp.dot(h, final_w.T, precision=hp) + final_b[None, :]


if __name__ == "__main__":
    # Small shapes consistent with the module: Encoder(input_dim, hidden_dims, latent_dim)
    INPUT_DIM, HIDDEN_DIMS, LATENT_DIM = 32, [64, 48], 16
    N = 16  # batch (multiple of 8 keeps sublane-dense blocks)

    key = jax.random.PRNGKey(0)
    key, kx = jax.random.split(key)
    x = jax.random.normal(kx, (N, INPUT_DIM), dtype=jnp.float32)

    layer_params_kernel = []   # (w, gamma, beta) -- hidden bias dropped (cancelled by BN)
    layer_params_ref = []      # (w, b, gamma, beta) -- PyTorch spec, bias included
    d_in = INPUT_DIM
    for d_out in HIDDEN_DIMS:
        key, kw, kb, kg, kbt = jax.random.split(key, 5)
        bound = 1.0 / math.sqrt(d_in)
        w = jax.random.uniform(kw, (d_out, d_in), jnp.float32, -bound, bound)
        b = jax.random.uniform(kb, (d_out,), jnp.float32, -bound, bound)
        g = 1.0 + 0.1 * jax.random.normal(kg, (d_out,), jnp.float32)
        bt = 0.1 * jax.random.normal(kbt, (d_out,), jnp.float32)
        layer_params_kernel.append((w, g, bt))
        layer_params_ref.append((w, b, g, bt))
        d_in = d_out

    key, kfw, kfb = jax.random.split(key, 3)
    bound = 1.0 / math.sqrt(d_in)
    final_w = jax.random.uniform(kfw, (LATENT_DIM, d_in), jnp.float32, -bound, bound)
    final_b = jax.random.uniform(kfb, (LATENT_DIM,), jnp.float32, -bound, bound)

    # ---- Correctness check: deterministic path (dropout off), f32 MXU operands.
    packed_f32 = pack_encoder_params(layer_params_kernel, final_w, final_b,
                                     mxu_dtype=jnp.float32)
    out_f32 = encoder_forward(packed_f32, x, seed=0, dropout_p=0.0)
    ref = _encoder_reference_no_dropout(x, layer_params_ref, final_w, final_b)
    assert out_f32.shape == (N, LATENT_DIM)
    assert jnp.allclose(out_f32, ref, atol=2e-2, rtol=2e-2), (
        "mismatch vs reference: max abs diff "
        f"{float(jnp.max(jnp.abs(out_f32 - ref))):.3e}")

    # ---- Full training-mode forward: bf16 MXU operands + Dropout(0.1).
    packed_bf16 = pack_encoder_params(layer_params_kernel, final_w, final_b,
                                      mxu_dtype=jnp.bfloat16)
    out = encoder_forward(packed_bf16, x, seed=1234, dropout_p=0.1)
    jax.block_until_ready(out)
    assert out.shape == (N, LATENT_DIM)
    print("KERNEL_OK")
</pallas_src>

<mosaic_0001>
module attributes {stable_mosaic.version = 11 : i64} {
  func.func @_encoder_kernel(%arg0: i32, %arg1: memref<1xi32, #tpu.memory_space<smem>>, %arg2: memref<16x128xf32, #tpu.memory_space<vmem>>, %arg3: memref<1x128x128xf32, #tpu.memory_space<vmem>>, %arg4: memref<1x1x128xf32, #tpu.memory_space<vmem>>, %arg5: memref<1x1x128xf32, #tpu.memory_space<vmem>>, %arg6: memref<1x1x128xf32, #tpu.memory_space<vmem>>, %arg7: memref<16x128xf32, #tpu.memory_space<vmem>>, %arg8: memref<16x128xf32, #tpu.memory_space<vmem>>) attributes {dimension_semantics = [#tpu.dimension_semantics<arbitrary>], iteration_bounds = array<i64: 3>, scalar_prefetch = 1 : i64, scratch_operands = 1 : i64, tpu.core_type = #tpu.core_type<tc>, window_params = [{pipeline_mode = #tpu.pipeline_mode<synchronous>, transform_indices = @transform_0, window_bounds = array<i64: 16, 128>}, {transform_indices = @transform_1, window_bounds = array<i64: 1, 128, 128>}, {transform_indices = @transform_2, window_bounds = array<i64: 1, 1, 128>}, {transform_indices = @transform_3, window_bounds = array<i64: 1, 1, 128>}, {transform_indices = @transform_4, window_bounds = array<i64: 1, 1, 128>}, {pipeline_mode = #tpu.pipeline_mode<synchronous>, transform_indices = @transform_5, window_bounds = array<i64: 16, 128>}]} {
    %c0_i32 = arith.constant 0 : i32
    %0 = arith.cmpi eq, %arg0, %c0_i32 : i32
    %1 = arith.extui %0 : i1 to i32
    %c0_i32_0 = arith.constant 0 : i32
    %2 = arith.cmpi ne, %1, %c0_i32_0 : i32
    scf.if %2 {
      %c0_8 = arith.constant 0 : index
      %c0_9 = arith.constant 0 : index
      %13 = vector.load %arg2[%c0_8, %c0_9] : memref<16x128xf32, #tpu.memory_space<vmem>>, vector<16x128xf32>
      %c0_10 = arith.constant 0 : index
      %c0_11 = arith.constant 0 : index
      %14 = vector.load %arg8[%c0_10, %c0_11] : memref<16x128xf32, #tpu.memory_space<vmem>>, vector<16x128xf32>
      tpu.vector_store %arg8[%c0_10, %c0_11], %13 {strides = array<i32>} : memref<16x128xf32, #tpu.memory_space<vmem>>, vector<16x128xf32>,
    } else {
    }
    %c0 = arith.constant 0 : index
    %c0_1 = arith.constant 0 : index
    %3 = vector.load %arg8[%c0, %c0_1] : memref<16x128xf32, #tpu.memory_space<vmem>>, vector<16x128xf32>
    %c0_2 = arith.constant 0 : index
    %c0_3 = arith.constant 0 : index
    %c0_4 = arith.constant 0 : index
    %4 = vector.load %arg3[%c0_2, %c0_3, %c0_4] : memref<1x128x128xf32, #tpu.memory_space<vmem>>, vector<1x128x128xf32>
    %5 = vector.shape_cast %4 : vector<1x128x128xf32> to vector<128x128xf32>
    %cst = arith.constant dense<0.000000e+00> : vector<16x128xf32>
    %6 = tpu.matmul %3, %5, %cst {dimension_numbers = #tpu.dot_dimension_numbers<[1], [0], [0], [1], [0, 0, 1, 1], [], []>} : vector<16x128xf32>, vector<128x128xf32>, vector<16x128xf32> -> vector<16x128xf32>
    %c2_i32 = arith.constant 2 : i32
    %7 = arith.cmpi slt, %arg0, %c2_i32 : i32
    %8 = arith.extui %7 : i1 to i32
    %c0_i32_5 = arith.constant 0 : i32
    %9 = arith.cmpi ne, %8, %c0_i32_5 : i32
    scf.if %9 {
      %cst_8 = arith.constant dense<0.000000e+00> : vector<128xf32>
      %13 = vector.multi_reduction <add>, %6, %cst_8 [0] : vector<16x128xf32> to vector<128xf32>
      %14 = vector.shape_cast %13 : vector<128xf32> to vector<1x128xf32>
      %cst_9 = arith.constant 6.250000e-02 : f32
      %15 = vector.broadcast %cst_9 : f32 to vector<1x128xf32>
      %16 = arith.mulf %14, %15 : vector<1x128xf32>
      %17 = arith.mulf %6, %6 : vector<16x128xf32>
      %cst_10 = arith.constant dense<0.000000e+00> : vector<128xf32>
      %18 = vector.multi_reduction <add>, %17, %cst_10 [0] : vector<16x128xf32> to vector<128xf32>
      %19 = vector.shape_cast %18 : vector<128xf32> to vector<1x128xf32>
      %cst_11 = arith.constant 6.250000e-02 : f32
      %20 = vector.broadcast %cst_11 : f32 to vector<1x128xf32>
      %21 = arith.mulf %19, %20 : vector<1x128xf32>
      %22 = arith.mulf %16, %16 : vector<1x128xf32>
      %23 = arith.subf %21, %22 : vector<1x128xf32>
      %cst_12 = arith.constant 0.000000e+00 : f32
      %24 = vector.broadcast %cst_12 : f32 to vector<1x128xf32>
      %25 = arith.maximumf %23, %24 : vector<1x128xf32>
      %c0_13 = arith.constant 0 : index
      %c0_14 = arith.constant 0 : index
      %c0_15 = arith.constant 0 : index
      %26 = vector.load %arg5[%c0_13, %c0_14, %c0_15] : memref<1x1x128xf32, #tpu.memory_space<vmem>>, vector<1x1x128xf32>
      %27 = vector.shape_cast %26 : vector<1x1x128xf32> to vector<1x128xf32>
      %cst_16 = arith.constant 9.99999974E-6 : f32
      %28 = vector.broadcast %cst_16 : f32 to vector<1x128xf32>
      %29 = arith.addf %25, %28 : vector<1x128xf32>
      %30 = math.rsqrt %29 : vector<1x128xf32>
      %31 = arith.mulf %27, %30 : vector<1x128xf32>
      %c0_17 = arith.constant 0 : index
      %c0_18 = arith.constant 0 : index
      %c0_19 = arith.constant 0 : index
      %32 = vector.load %arg6[%c0_17, %c0_18, %c0_19] : memref<1x1x128xf32, #tpu.memory_space<vmem>>, vector<1x1x128xf32>
      %33 = vector.shape_cast %32 : vector<1x1x128xf32> to vector<1x128xf32>
      %34 = arith.mulf %16, %31 : vector<1x128xf32>
      %35 = arith.subf %33, %34 : vector<1x128xf32>
      %36 = vector.broadcast %31 : vector<1x128xf32> to vector<16x128xf32>
      %37 = arith.mulf %6, %36 : vector<16x128xf32>
      %38 = vector.broadcast %35 : vector<1x128xf32> to vector<16x128xf32>
      %39 = arith.addf %37, %38 : vector<16x128xf32>
      %cst_20 = arith.constant 2.000000e-01 : f32
      %40 = vector.broadcast %cst_20 : f32 to vector<16x128xf32>
      %41 = arith.mulf %40, %39 : vector<16x128xf32>
      %42 = arith.maximumf %39, %41 : vector<16x128xf32>
      %c0_21 = arith.constant 0 : index
      %c0_22 = arith.constant 0 : index
      %43 = vector.load %arg8[%c0_21, %c0_22] : memref<16x128xf32, #tpu.memory_space<vmem>>, vector<16x128xf32>
      tpu.vector_store %arg8[%c0_21, %c0_22], %42 {strides = array<i32>} : memref<16x128xf32, #tpu.memory_space<vmem>>, vector<16x128xf32>,
    } else {
    }
    %c2_i32_6 = arith.constant 2 : i32
    %10 = arith.cmpi eq, %arg0, %c2_i32_6 : i32
    %11 = arith.extui %10 : i1 to i32
    %c0_i32_7 = arith.constant 0 : i32
    %12 = arith.cmpi ne, %11, %c0_i32_7 : i32
    scf.if %12 {
      %c0_8 = arith.constant 0 : index
      %c0_9 = arith.constant 0 : index
      %c0_10 = arith.constant 0 : index
      %13 = vector.load %arg4[%c0_8, %c0_9, %c0_10] : memref<1x1x128xf32, #tpu.memory_space<vmem>>, vector<1x1x128xf32>
      %14 = vector.shape_cast %13 : vector<1x1x128xf32> to vector<1x128xf32>
      %15 = vector.broadcast %14 : vector<1x128xf32> to vector<16x128xf32>
      %16 = arith.addf %6, %15 : vector<16x128xf32>
      %c0_11 = arith.constant 0 : index
      %c0_12 = arith.constant 0 : index
      %17 = vector.load %arg7[%c0_11, %c0_12] : memref<16x128xf32, #tpu.memory_space<vmem>>, vector<16x128xf32>
      tpu.vector_store %arg7[%c0_11, %c0_12], %16 {strides = array<i32>} : memref<16x128xf32, #tpu.memory_space<vmem>>, vector<16x128xf32>,
    } else {
    }
    return
  }
  func.func @transform_0(%arg0: i32, %arg1: memref<1xi32, #tpu.memory_space<smem>>) -> (i32, i32) {
    %c0_i32 = arith.constant 0 : i32
    %c0_i32_0 = arith.constant 0 : i32
    %c0_i32_1 = arith.constant 0 : i32
    return %c0_i32, %c0_i32_0 : i32, i32
  }
  func.func @transform_1(%arg0: i32, %arg1: memref<1xi32, #tpu.memory_space<smem>>) -> (i32, i32, i32) {
    %c0_i32 = arith.constant 0 : i32
    %c0_i32_0 = arith.constant 0 : i32
    %c0_i32_1 = arith.constant 0 : i32
    return %arg0, %c0_i32, %c0_i32_0 : i32, i32, i32
  }
  func.func @transform_2(%arg0: i32, %arg1: memref<1xi32, #tpu.memory_space<smem>>) -> (i32, i32, i32) {
    %c0_i32 = arith.constant 0 : i32
    %c0_i32_0 = arith.constant 0 : i32
    %c0_i32_1 = arith.constant 0 : i32
    return %arg0, %c0_i32, %c0_i32_0 : i32, i32, i32
  }
  func.func @transform_3(%arg0: i32, %arg1: memref<1xi32, #tpu.memory_space<smem>>) -> (i32, i32, i32) {
    %c0_i32 = arith.constant 0 : i32
    %c0_i32_0 = arith.constant 0 : i32
    %c0_i32_1 = arith.constant 0 : i32
    return %arg0, %c0_i32, %c0_i32_0 : i32, i32, i32
  }
  func.func @transform_4(%arg0: i32, %arg1: memref<1xi32, #tpu.memory_space<smem>>) -> (i32, i32, i32) {
    %c0_i32 = arith.constant 0 : i32
    %c0_i32_0 = arith.constant 0 : i32
    %c0_i32_1 = arith.constant 0 : i32
    return %arg0, %c0_i32, %c0_i32_0 : i32, i32, i32
  }
  func.func @transform_5(%arg0: i32, %arg1: memref<1xi32, #tpu.memory_space<smem>>) -> (i32, i32) {
    %c0_i32 = arith.constant 0 : i32
    %c0_i32_0 = arith.constant 0 : i32
    %c0_i32_1 = arith.constant 0 : i32
    return %c0_i32, %c0_i32_0 : i32, i32
  }
}

</mosaic_0001>

<llo_original>
// kernel: tpu_custom_call.1
$region0: #{tpu_custom_call.1}
  #allocation0 [shape = 'u32[]', space=smem, size = 0x4, offset = 0x4, fixed_abs, tag = 'smem constant byte address 0x4 - core index']
  #allocation1 [shape = 'u32[144,128]{1,0:T(1,128)}', space=vmem, size = 0x12000, scoped, tag = 'internal scratch']
  #allocation2 [shape = 'f32[16,128]{1,0:T(8,128)}', space=vmem, size = 0x2000, scoped, tag = 'scratch operand']
  #allocation3 [shape = 's32[1]{0}', space=sflag, size = 0x4, scoped, tag = 'scoped memory for tpu_custom_call.1']
  #allocation4 [shape = 's32[1]{0:T(128)S(6)}', space=smem, size = 0x200, scoped, tag = 'prefetched SMEM operand 0']
  %s0 = inlined_call_operand.<no memory space> [shape: s32[1], index: 0, kind: input, shape index: {}]
  %s1 = inlined_call_operand.hbm [shape: f32[16,128], index: 1, kind: input, shape index: {}]
  %s2 = inlined_call_operand.hbm [shape: f32[3,128,128], index: 2, kind: input, shape index: {}]
  %s3 = inlined_call_operand.vmem [shape: f32[3,1,128], index: 3, kind: input, shape index: {}]
  %s4 = inlined_call_operand.vmem [shape: f32[3,1,128], index: 4, kind: input, shape index: {}]
  %s5 = inlined_call_operand.vmem [shape: f32[3,1,128], index: 5, kind: input, shape index: {}]
  %s6 = inlined_call_operand.hbm [shape: f32[16,128], index: 6, kind: output, shape index: {}]
  %s7 = sld [smem:[#allocation0]]
  $region73: #{tpu_custom_call.1} parent=0
    _
  %s9 = ssub.s32 1, %s7
  %s10 = scalar_select 0, %s9, %s7
  %11 = sst [smem:[#allocation4]] %s0
  $region1: #{tpu_custom_call.1} parent=0
    #allocation5 [shape = 'u8[8192]{0}', space=vmem, size = 0x2000, scoped, tag = 'input window, operand 1, single buffered']
    #allocation6 [shape = 's32[2]{0}', space=sflag, size = 0x8, scoped, tag = 'scoped memory for tpu_custom_call.1']
    #allocation7 [shape = 's32[2]{0}', space=sflag, size = 0x8, scoped, tag = 'scoped memory for tpu_custom_call.1']
    #allocation8 [shape = 'u8[131072]{0}', space=vmem, size = 0x20000, scoped, tag = 'input window, operand 2']
    #allocation9 [shape = 's32[2]{0}', space=sflag, size = 0x8, scoped, tag = 'scoped memory for tpu_custom_call.1']
    #allocation10 [shape = 'u8[8192]{0}', space=vmem, size = 0x2000, scoped, tag = 'output window, operand 0, single buffered']
    %12 = vsyncpa [#allocation6], 0
    %13 = vsyncpa [#allocation9], 0
    %s14 = scalar_lea.sflag [#allocation9], 1
    %15 = vsyncpa %s14, 0
    %16 = vsyncpa [#allocation7], 0
    loop: start=0, step=1, limit=5
    $region2: #{tpu_custom_call.1} parent=1 // loop_pre_header
      _
    $region3: #{tpu_custom_call.1} parent=1 // loop_header
      %s18 = sphi 0, %s22
      %p19 = scmp.ge.s32.totalorder %s18, 5
      %s26 = sphi 0, %s26
      %s28 = sphi 0, %s26
      %s29 = sphi 0, %s28
      %s43 = sphi 0, %s29
      %s49 = sphi 0, %s51
      %s52 = sphi 0, %s49
      %s53 = sphi 0, %s52
      %s69 = sphi 0, %s53
      %s75 = sphi 0, %s77
      %s78 = sphi 0, %s75
      %s79 = sphi 0, %s78
      %s95 = sphi 0, %s79
      %s101 = sphi 0, %s103
      %s104 = sphi 0, %s101
      %s105 = sphi 0, %s104
      %s121 = sphi 0, %s105
      %s127 = sphi 0, %s129
      %s130 = sphi 0, %s127
      %s131 = sphi 0, %s130
      %s147 = sphi 0, %s131
      %s151 = sphi 0, %s151
      %s153 = sphi 0, %s151
      %s154 = sphi 0, %s153
      %s168 = sphi 0, %s154
    $region4: #{tpu_custom_call.1} parent=1 // loop_header_branch
      %21 = sbr.rel (%p19) target = $region8
    $region5: #{tpu_custom_call.1} parent=1 // loop_body
      %s23 = ssub.s32 %s18, 1
      %s24 = ssub.s32 %s18, 2
      %s25 = sadd.s32 %s18, 1
      %s27 = sadd.s32 %s26, 1
      %p30 = scmp.eq.s32.totalorder %s18, 2
      %p31 = scmp.ne.s32.totalorder %s26, %s28
      %p32 = scmp.eq.s32.totalorder %s18, 0
      %p33 = por %p31, %p32
      %p34 = scmp.ne.s32.totalorder %s26, %s28
      %p35 = scmp.eq.s32.totalorder %s23, 2
      %p36 = por %p34, %p35
      %p37 = scmp.ne.s32.totalorder %s28, %s29
      %p38 = scmp.eq.s32.totalorder %s23, 0
      %p39 = por %p37, %p38
      %p40 = scmp.ne.s32.totalorder %s28, %s29
      %p41 = scmp.eq.s32.totalorder %s24, 2
      %p42 = por %p40, %p41
      %p44 = scmp.ne.s32.totalorder %s29, %s43
      %p45 = scmp.eq.s32.totalorder %s24, 0
      %p46 = por %p44, %p45
      %s47 = ssub.s32 %s18, %s25
      %p48 = scmp.eq.s32.totalorder %s47, 0
      %s50 = sadd.s32 %s49, 1
      %s51 = scalar_select %p48, %s49, %s50
      %p54 = pneg %p48
      %p55 = scmp.eq.s32.totalorder %s18, 2
      %p56 = por %p54, %p55
      %p57 = scmp.ne.s32.totalorder %s49, %s52
      %p58 = scmp.eq.s32.totalorder %s18, 0
      %p59 = por %p57, %p58
      %p60 = scmp.ne.s32.totalorder %s49, %s52
      %p61 = scmp.eq.s32.totalorder %s23, 2
      %p62 = por %p60, %p61
      %p63 = scmp.ne.s32.totalorder %s52, %s53
      %p64 = scmp.eq.s32.totalorder %s23, 0
      %p65 = por %p63, %p64
      %p66 = scmp.ne.s32.totalorder %s52, %s53
      %p67 = scmp.eq.s32.totalorder %s24, 2
      %p68 = por %p66, %p67
      %p70 = scmp.ne.s32.totalorder %s53, %s69
      %p71 = scmp.eq.s32.totalorder %s24, 0
      %p72 = por %p70, %p71
      %s73 = ssub.s32 %s18, %s25
      %p74 = scmp.eq.s32.totalorder %s73, 0
      %s76 = sadd.s32 %s75, 1
      %s77 = scalar_select %p74, %s75, %s76
      %p80 = pneg %p74
      %p81 = scmp.eq.s32.totalorder %s18, 2
      %p82 = por %p80, %p81
      %p83 = scmp.ne.s32.totalorder %s75, %s78
      %p84 = scmp.eq.s32.totalorder %s18, 0
      %p85 = por %p83, %p84
      %p86 = scmp.ne.s32.totalorder %s75, %s78
      %p87 = scmp.eq.s32.totalorder %s23, 2
      %p88 = por %p86, %p87
      %p89 = scmp.ne.s32.totalorder %s78, %s79
      %p90 = scmp.eq.s32.totalorder %s23, 0
      %p91 = por %p89, %p90
      %p92 = scmp.ne.s32.totalorder %s78, %s79
      %p93 = scmp.eq.s32.totalorder %s24, 2
      %p94 = por %p92, %p93
      %p96 = scmp.ne.s32.totalorder %s79, %s95
      %p97 = scmp.eq.s32.totalorder %s24, 0
      %p98 = por %p96, %p97
      %s99 = ssub.s32 %s18, %s25
      %p100 = scmp.eq.s32.totalorder %s99, 0
      %s102 = sadd.s32 %s101, 1
      %s103 = scalar_select %p100, %s101, %s102
      %p106 = pneg %p100
      %p107 = scmp.eq.s32.totalorder %s18, 2
      %p108 = por %p106, %p107
      %p109 = scmp.ne.s32.totalorder %s101, %s104
      %p110 = scmp.eq.s32.totalorder %s18, 0
      %p111 = por %p109, %p110
      %p112 = scmp.ne.s32.totalorder %s101, %s104
      %p113 = scmp.eq.s32.totalorder %s23, 2
      %p114 = por %p112, %p113
      %p115 = scmp.ne.s32.totalorder %s104, %s105
      %p116 = scmp.eq.s32.totalorder %s23, 0
      %p117 = por %p115, %p116
      %p118 = scmp.ne.s32.totalorder %s104, %s105
      %p119 = scmp.eq.s32.totalorder %s24, 2
      %p120 = por %p118, %p119
      %p122 = scmp.ne.s32.totalorder %s105, %s121
      %p123 = scmp.eq.s32.totalorder %s24, 0
      %p124 = por %p122, %p123
      %s125 = ssub.s32 %s18, %s25
      %p126 = scmp.eq.s32.totalorder %s125, 0
      %s128 = sadd.s32 %s127, 1
      %s129 = scalar_select %p126, %s127, %s128
      %p132 = pneg %p126
      %p133 = scmp.eq.s32.totalorder %s18, 2
      %p134 = por %p132, %p133
      %p135 = scmp.ne.s32.totalorder %s127, %s130
      %p136 = scmp.eq.s32.totalorder %s18, 0
      %p137 = por %p135, %p136
      %p138 = scmp.ne.s32.totalorder %s127, %s130
      %p139 = scmp.eq.s32.totalorder %s23, 2
      %p140 = por %p138, %p139
      %p141 = scmp.ne.s32.totalorder %s130, %s131
      %p142 = scmp.eq.s32.totalorder %s23, 0
      %p143 = por %p141, %p142
      %p144 = scmp.ne.s32.totalorder %s130, %s131
      %p145 = scmp.eq.s32.totalorder %s24, 2
      %p146 = por %p144, %p145
      %p148 = scmp.ne.s32.totalorder %s131, %s147
      %p149 = scmp.eq.s32.totalorder %s24, 0
      %p150 = por %p148, %p149
      %s152 = sadd.s32 %s151, 1
      %p155 = scmp.eq.s32.totalorder %s18, 2
      %p156 = scmp.ne.s32.totalorder %s151, %s153
      %p157 = scmp.eq.s32.totalorder %s18, 0
      %p158 = por %p156, %p157
      %p159 = scmp.ne.s32.totalorder %s151, %s153
      %p160 = scmp.eq.s32.totalorder %s23, 2
      %p161 = por %p159, %p160
      %p162 = scmp.ne.s32.totalorder %s153, %s154
      %p163 = scmp.eq.s32.totalorder %s23, 0
      %p164 = por %p162, %p163
      %p165 = scmp.ne.s32.totalorder %s153, %s154
      %p166 = scmp.eq.s32.totalorder %s24, 2
      %p167 = por %p165, %p166
      %p169 = scmp.ne.s32.totalorder %s154, %s168
      %p170 = scmp.eq.s32.totalorder %s24, 0
      %p171 = por %p169, %p170
      %p172 = scmp.le.s32.totalorder 1, %s18
      %p173 = scmp.lt.s32.totalorder %s18, 4
      %p174 = pnand %p172, %p173
      %p175 = pneg %p174
      // Predicated region
      $region9: #{tpu_custom_call.1} parent=5 // pred_check
        _
      $region10: #{tpu_custom_call.1} parent=5 // pred_check_branch
        %177 = sbr.rel (%p174) target = $region12
      $region11: #{tpu_custom_call.1} parent=5 // pred_region
        %s178 = ssub.s32 %s18, 1
        // Predicated region
        $region13: #{tpu_custom_call.1} parent=11 // pred_check
          %p179 = pneg %p39
        $region14: #{tpu_custom_call.1} parent=11 // pred_check_branch
          %181 = sbr.rel (%p179) target = $region16
        $region15: #{tpu_custom_call.1} parent=11 // pred_region
          %s183 = ssub.s32 256, 256
          %184 = vsyncadd [#allocation6], %s183
          %s185 = sshll.u32 [#allocation5], 4
          %s186 = int_to_ptr.vmem [resolvable:$true] %s185
          %191 = dma.hbm_to_vmem [thread:$0]  %s1, 256, %s186, [#allocation6], 128, 128, 8
        $region16: #{tpu_custom_call.1} parent=11 // pred_fallthru
          _
      $region12: #{tpu_custom_call.1} parent=5 // pred_fallthru
        _
      %p192 = scmp.lt.s32.totalorder %s18, 3
      // Predicated region
      $region17: #{tpu_custom_call.1} parent=5 // pred_check
        %p193 = pneg %p192
      $region18: #{tpu_custom_call.1} parent=5 // pred_check_branch
        %195 = sbr.rel (%p193) target = $region20
      $region19: #{tpu_custom_call.1} parent=5 // pred_region
        // Predicated region
        $region21: #{tpu_custom_call.1} parent=19 // pred_check
          %p196 = pneg %p59
        $region22: #{tpu_custom_call.1} parent=19 // pred_check_branch
          %198 = sbr.rel (%p196) target = $region24
        $region23: #{tpu_custom_call.1} parent=19 // pred_region
          %s199 = sand.u32 %s49, 1
          %s200 = scalar_lea.sflag [#allocation9], %s199
          %s201 = sand.u32 %s49, 1
          %s202 = smul.addr %s201, 128
          %s203 = scalar_lea.vmem [#allocation8], %s202
          %s205 = ssub.s32 2048, 2048
          %206 = vsyncadd %s200, %s205
          %s207 = smul.addr %s18, 16
          %s208 = smul.addr %s207, 128
          %s209 = scalar_lea.hbm %s2, %s208
          %s210 = sshll.u32 %s203, 4
          %s211 = int_to_ptr.vmem [resolvable:$true] %s210
          %216 = dma.hbm_to_vmem [thread:$0]  %s209, 2048, %s211, %s200, 128, 128, 8
        $region24: #{tpu_custom_call.1} parent=19 // pred_fallthru
          _
        // Predicated region
        $region25: #{tpu_custom_call.1} parent=19 // pred_check
          %p217 = pneg %p85
        $region26: #{tpu_custom_call.1} parent=19 // pred_check_branch
          %219 = sbr.rel (%p217) target = $region28
        $region27: #{tpu_custom_call.1} parent=19 // pred_region
          %p220 = scmp.lt.s32.totalorder %s18, 2
          %s221 = scalar_select %p220, %s18, 2
          %s222 = scalar_lea.vmem %s3, %s221
        $region28: #{tpu_custom_call.1} parent=19 // pred_fallthru
          _
        // Predicated region
        $region29: #{tpu_custom_call.1} parent=19 // pred_check
          %p223 = pneg %p111
        $region30: #{tpu_custom_call.1} parent=19 // pred_check_branch
          %225 = sbr.rel (%p223) target = $region32
        $region31: #{tpu_custom_call.1} parent=19 // pred_region
          %p226 = scmp.lt.s32.totalorder %s18, 2
          %s227 = scalar_select %p226, %s18, 2
          %s228 = scalar_lea.vmem %s4, %s227
        $region32: #{tpu_custom_call.1} parent=19 // pred_fallthru
          _
        // Predicated region
        $region33: #{tpu_custom_call.1} parent=19 // pred_check
          %p229 = pneg %p137
        $region34: #{tpu_custom_call.1} parent=19 // pred_check_branch
          %231 = sbr.rel (%p229) target = $region36
        $region35: #{tpu_custom_call.1} parent=19 // pred_region
          %p232 = scmp.lt.s32.totalorder %s18, 2
          %s233 = scalar_select %p232, %s18, 2
          %s234 = scalar_lea.vmem %s5, %s233
        $region36: #{tpu_custom_call.1} parent=19 // pred_fallthru
          _
      $region20: #{tpu_custom_call.1} parent=5 // pred_fallthru
        _
      %p235 = scmp.le.s32.totalorder 1, %s18
      %p236 = scmp.lt.s32.totalorder %s18, 4
      %p237 = pnand %p235, %p236
      %p238 = pneg %p237
      // Predicated region
      $region37: #{tpu_custom_call.1} parent=5 // pred_check
        _
      $region38: #{tpu_custom_call.1} parent=5 // pred_check_branch
        %240 = sbr.rel (%p237) target = $region40
      $region39: #{tpu_custom_call.1} parent=5 // pred_region
        %s241 = ssub.s32 %s18, 1
        // Predicated region
        $region41: #{tpu_custom_call.1} parent=39 // pred_check
          %p242 = pneg %p39
        $region42: #{tpu_custom_call.1} parent=39 // pred_check_branch
          %244 = sbr.rel (%p242) target = $region44
        $region43: #{tpu_custom_call.1} parent=39 // pred_region
          %245 = dma.done [#allocation6], 256
        $region44: #{tpu_custom_call.1} parent=39 // pred_fallthru
          _
        %s246 = sand.u32 %s52, 1
        %s247 = scalar_lea.sflag [#allocation9], %s246
        %s248 = sand.u32 %s52, 1
        %s249 = smul.addr %s248, 128
        %s250 = scalar_lea.vmem [#allocation8], %s249
        // Predicated region
        $region45: #{tpu_custom_call.1} parent=39 // pred_check
          %p251 = pneg %p65
        $region46: #{tpu_custom_call.1} parent=39 // pred_check_branch
          %253 = sbr.rel (%p251) target = $region48
        $region47: #{tpu_custom_call.1} parent=39 // pred_region
          %254 = dma.done %s247, 2048
        $region48: #{tpu_custom_call.1} parent=39 // pred_fallthru
          _
        %p255 = pneg %p39
        %p256 = pneg %p36
        %s257 = sand.u32 %s52, 1
        %s258 = scalar_lea.sflag [#allocation9], %s257
        %s259 = sand.u32 %s52, 1
        %s260 = smul.addr %s259, 128
        %s261 = scalar_lea.vmem [#allocation8], %s260
        %p262 = pneg %p65
        %p263 = pneg %p62
        %p264 = scmp.lt.s32.totalorder %s23, 2
        %s265 = scalar_select %p264, %s23, 2
        %s266 = scalar_lea.vmem %s3, %s265
        %p267 = pneg %p91
        %p268 = pneg %p88
        %p269 = scmp.lt.s32.totalorder %s23, 2
        %s270 = scalar_select %p269, %s23, 2
        %s271 = scalar_lea.vmem %s4, %s270
        %p272 = pneg %p117
        %p273 = pneg %p114
        %p274 = scmp.lt.s32.totalorder %s23, 2
        %s275 = scalar_select %p274, %s23, 2
        %s276 = scalar_lea.vmem %s5, %s275
        %p277 = pneg %p143
        %p278 = pneg %p140
        %p279 = pneg %p164
        %p280 = pneg %p161
        %p281 = scmp.lt.s32.totalorder %s23, 2
        %s282 = scalar_select %p281, %s23, 2
        %s283 = scalar_lea.vmem %s3, %s282
        %p284 = scmp.lt.s32.totalorder %s23, 2
        %s285 = scalar_select %p284, %s23, 2
        %s286 = scalar_lea.vmem %s4, %s285
        %p287 = scmp.lt.s32.totalorder %s23, 2
        %s288 = scalar_select %p287, %s23, 2
        %s289 = scalar_lea.vmem %s5, %s288
        %p290 = scmp.eq.s32.totalorder %s23, 0
        // Predicated region
        $region49: #{tpu_custom_call.1} parent=39 // pred_check
          %p291 = pneg %p290
        $region50: #{tpu_custom_call.1} parent=39 // pred_check_branch
          %293 = sbr.rel (%p291) target = $region52
        $region51: #{tpu_custom_call.1} parent=39 // pred_region
          %v294 = vld [vmem:[#allocation5] sm:$0xff]
          %v295 = vld [vmem:[#allocation5 + $0x8] sm:$0xff]
          %296 = vst [vmem:[#allocation2] sm:$0xff] %v294
          %297 = vst [vmem:[#allocation2 + $0x8] sm:$0xff] %v295
        $region52: #{tpu_custom_call.1} parent=39 // pred_fallthru
          _
        %v298 = vld [vmem:[#allocation2] sm:$0xff]
        %v299 = vld [vmem:[#allocation2 + $0x8] sm:$0xff]
        %v300 = vld [vmem:[%s250] sm:$0xff]
        %v301 = vld [vmem:[%s250 + $0x8] sm:$0xff]
        %v302 = vld [vmem:[%s250 + $0x10] sm:$0xff]
        %v303 = vld [vmem:[%s250 + $0x18] sm:$0xff]
        %v304 = vld [vmem:[%s250 + $0x20] sm:$0xff]
        %v305 = vld [vmem:[%s250 + $0x28] sm:$0xff]
        %v306 = vld [vmem:[%s250 + $0x30] sm:$0xff]
        %v307 = vld [vmem:[%s250 + $0x38] sm:$0xff]
        %v308 = vld [vmem:[%s250 + $0x40] sm:$0xff]
        %v309 = vld [vmem:[%s250 + $0x48] sm:$0xff]
        %v310 = vld [vmem:[%s250 + $0x50] sm:$0xff]
        %v311 = vld [vmem:[%s250 + $0x58] sm:$0xff]
        %v312 = vld [vmem:[%s250 + $0x60] sm:$0xff]
        %v313 = vld [vmem:[%s250 + $0x68] sm:$0xff]
        %v314 = vld [vmem:[%s250 + $0x70] sm:$0xff]
        %v315 = vld [vmem:[%s250 + $0x78] sm:$0xff]
        %316 = vmatprep.subr.mxu0 0.0
        %317 = vmatpush1.msra.mxu0 %v300
        %318 = vmatprep.subr.mxu0 0.0
        %319 = vmatpush1.msra.mxu0 %v301
        %320 = vmatprep.subr.mxu0 0.0
        %321 = vmatpush1.msra.mxu0 %v302
        %322 = vmatprep.subr.mxu0 0.0
        %323 = vmatpush1.msra.mxu0 %v303
        %324 = vmatprep.subr.mxu0 0.0
        %325 = vmatpush1.msra.mxu0 %v304
        %326 = vmatprep.subr.mxu0 0.0
        %327 = vmatpush1.msra.mxu0 %v305
        %328 = vmatprep.subr.mxu0 0.0
        %329 = vmatpush1.msra.mxu0 %v306
        %330 = vmatprep.subr.mxu0 0.0
        %331 = vmatpush1.msra.mxu0 %v307
        %332 = vmatprep.subr.mxu0 0.0
        %333 = vmatpush1.msra.mxu0 %v308
        %334 = vmatprep.subr.mxu0 0.0
        %335 = vmatpush1.msra.mxu0 %v309
        %336 = vmatprep.subr.mxu0 0.0
        %337 = vmatpush1.msra.mxu0 %v310
        %338 = vmatprep.subr.mxu0 0.0
        %339 = vmatpush1.msra.mxu0 %v311
        %340 = vmatprep.subr.mxu0 0.0
        %341 = vmatpush1.msra.mxu0 %v312
        %342 = vmatprep.subr.mxu0 0.0
        %343 = vmatpush1.msra.mxu0 %v313
        %344 = vmatprep.subr.mxu0 0.0
        %345 = vmatpush1.msra.mxu0 %v314
        %346 = vmatprep.subr.mxu0 0.0
        %347 = vmatpush1.msra.mxu0 %v315
        %348 = vmatprep.subr.mxu0 0.0
        %349 = vmatpush1.msra.mxu0 0.0
        %350 = vmatprep.subr.mxu0 0.0
        %351 = vmatpush1.msra.mxu0 0.0
        %352 = vmatprep.subr.mxu0 0.0
        %353 = vmatpush1.msra.mxu0 0.0
        %354 = vmatprep.subr.mxu0 0.0
        %355 = vmatpush1.msra.mxu0 0.0
        %356 = vmatprep.subr.mxu0 0.0
        %357 = vmatpush1.msra.mxu0 0.0
        %358 = vmatprep.subr.mxu0 0.0
        %359 = vmatpush1.msra.mxu0 0.0
        %360 = vmatprep.subr.mxu0 0.0
        %361 = vmatpush1.msra.mxu0 0.0
        %362 = vmatprep.subr.mxu0 0.0
        %363 = vmatpush1.msra.mxu0 0.0
        %364 = vmatprep.subr.mxu0 0.0
        %365 = vmatpush1.msra.mxu0 0.0
        %366 = vmatprep.subr.mxu0 0.0
        %367 = vmatpush1.msra.mxu0 0.0
        %368 = vmatprep.subr.mxu0 0.0
        %369 = vmatpush1.msra.mxu0 0.0
        %370 = vmatprep.subr.mxu0 0.0
        %371 = vmatpush1.msra.mxu0 0.0
        %372 = vmatprep.subr.mxu0 0.0
        %373 = vmatpush1.msra.mxu0 0.0
        %374 = vmatprep.subr.mxu0 0.0
        %375 = vmatpush1.msra.mxu0 0.0
        %376 = vmatprep.subr.mxu0 0.0
        %377 = vmatpush1.msra.mxu0 0.0
        %378 = vmatprep.subr.mxu0 0.0
        %379 = vmatpush1.msra.mxu0 0.0
        %380 = vmatprep.mubr.f32.mxu0 0.0
        %381 = vmatmul.mubr.f32.gmra.mrb[0].mxu0 %v298
        %v382 = vpop.f32.mrb[0].mxu0
        %v383 = vadd.f32 0.0, %v382
        %v384 = vpop.f32.mrb[0].mxu0
        %385 = vmatprep.mubr.f32.mxu0 0.0
        %386 = vmatmul.mubr.f32.gmra.mrb[0].mxu0 %v299
        %v387 = vpop.f32.mrb[0].mxu0
        %v388 = vadd.f32 0.0, %v387
        %v389 = vpop.f32.mrb[0].mxu0
        %390 = vdwg.mxu0
        %p391 = scmp.lt.s32.totalorder %s23, 2
        // Predicated region
        $region53: #{tpu_custom_call.1} parent=39 // pred_check
          %p392 = pneg %p391
        $region54: #{tpu_custom_call.1} parent=39 // pred_check_branch
          %394 = sbr.rel (%p392) target = $region56
        $region55: #{tpu_custom_call.1} parent=39 // pred_region
          %v395 = vadd.f32 %v383, %v388
          %v396 = vrot.slane %v395, 4
          %v397 = vadd.f32 %v395, %v396
          %v398 = vrot.slane %v397, 2
          %v399 = vadd.f32 %v397, %v398
          %v400 = vrot.slane %v399, 1
          %v401 = vadd.f32 %v399, %v400
          %v402 = vmul.f32 %v401, 0.0625
          %v403 = vmul.f32 %v383, %v383
          %v404 = vmul.f32 %v388, %v388
          %v405 = vadd.f32 %v403, %v404
          %v406 = vrot.slane %v405, 4
          %v407 = vadd.f32 %v405, %v406
          %v408 = vrot.slane %v407, 2
          %v409 = vadd.f32 %v407, %v408
          %v410 = vrot.slane %v409, 1
          %v411 = vadd.f32 %v409, %v410
          %v412 = vmul.f32 %v411, 0.0625
          %v413 = vmul.f32 %v402, %v402
          %v414 = vsub.f32 %v412, %v413
          %v415 = vmax.f32 %v414, 0.0
          %v416 = vld [vmem:[%s286] sm:$0x1]
          %v417 = vadd.f32 %v415, 1e-05
          %v418 = vrsqrt.pop %v417
          %v419 = vmul.f32 %v416, %v418
          %v420 = vld [vmem:[%s289] sm:$0x1]
          %v421 = vmul.f32 %v402, %v419
          %v422 = vsub.f32 %v420, %v421
          %v424 = vlaneseq
          %v425 = vshrl.u32 %v424, 7
          %v426 = vsub.s32 0, %v425
          %v427 = vrot.slane %v419, %v426
          %v429 = vmul.f32 %v383, %v427
          %v430 = vmul.f32 %v388, %v427
          %v432 = vlaneseq
          %v433 = vshrl.u32 %v432, 7
          %v434 = vsub.s32 0, %v433
          %v435 = vrot.slane %v422, %v434
          %v437 = vadd.f32 %v429, %v435
          %v438 = vadd.f32 %v430, %v435
          %v439 = vmul.f32 %v437, 0.2
          %v440 = vmul.f32 %v438, 0.2
          %v441 = vmax.f32 %v437, %v439
          %v442 = vmax.f32 %v438, %v440
          %443 = vst [vmem:[#allocation2] sm:$0xff] %v441
          %444 = vst [vmem:[#allocation2 + $0x8] sm:$0xff] %v442
        $region56: #{tpu_custom_call.1} parent=39 // pred_fallthru
          _
        %p445 = scmp.eq.s32.totalorder %s23, 2
        // Predicated region
        $region57: #{tpu_custom_call.1} parent=39 // pred_check
          %p446 = pneg %p445
        $region58: #{tpu_custom_call.1} parent=39 // pred_check_branch
          %448 = sbr.rel (%p446) target = $region60
        $region59: #{tpu_custom_call.1} parent=39 // pred_region
          %v449 = vld [vmem:[%s283] sm:$0x1]
          %v451 = vlaneseq
          %v452 = vshrl.u32 %v451, 7
          %v453 = vsub.s32 0, %v452
          %v454 = vrot.slane %v449, %v453
          %v456 = vadd.f32 %v383, %v454
          %v457 = vadd.f32 %v388, %v454
          %458 = vst [vmem:[#allocation10] sm:$0xff] %v456
          %459 = vst [vmem:[#allocation10 + $0x8] sm:$0xff] %v457
        $region60: #{tpu_custom_call.1} parent=39 // pred_fallthru
          _
        // Predicated region
        $region61: #{tpu_custom_call.1} parent=39 // pred_check
          %p460 = pneg %p161
        $region62: #{tpu_custom_call.1} parent=39 // pred_check_branch
          %462 = sbr.rel (%p460) target = $region64
        $region63: #{tpu_custom_call.1} parent=39 // pred_region
          %s464 = ssub.s32 256, 256
          %465 = vsyncadd [#allocation7], %s464
          %s466 = sshll.u32 [#allocation10], 4
          %s467 = int_to_ptr.vmem [resolvable:$true] %s466
          %472 = dma.vmem_to_hbm [thread:$0]  %s467, 256, %s6, [#allocation7], 128, 128, 8
        $region64: #{tpu_custom_call.1} parent=39 // pred_fallthru
          _
        // Predicated region
        $region65: #{tpu_custom_call.1} parent=39 // pred_check
          %p473 = pneg %p161
        $region66: #{tpu_custom_call.1} parent=39 // pred_check_branch
          %475 = sbr.rel (%p473) target = $region68
        $region67: #{tpu_custom_call.1} parent=39 // pred_region
          %476 = dma.done [#allocation7], 256
        $region68: #{tpu_custom_call.1} parent=39 // pred_fallthru
          _
      $region40: #{tpu_custom_call.1} parent=5 // pred_fallthru
        _
      %p477 = scmp.le.s32.totalorder 2, %s18
      // Predicated region
      $region69: #{tpu_custom_call.1} parent=5 // pred_check
        %p478 = pneg %p477
      $region70: #{tpu_custom_call.1} parent=5 // pred_check_branch
        %480 = sbr.rel (%p478) target = $region72
      $region71: #{tpu_custom_call.1} parent=5 // pred_region
        %s481 = ssub.s32 %s18, 2
      $region72: #{tpu_custom_call.1} parent=5 // pred_fallthru
        _
    $region6: #{tpu_custom_call.1} parent=1 // loop_footer
      %s22 = sadd.s32 1, %s18
    $region7: #{tpu_custom_call.1} parent=1 // loop_footer_branch
      %17 = sbr.rel target = $region3
    $region8: #{tpu_custom_call.1} parent=1 // loop_exit
      _
    %482 = vsyncpa [#allocation6], 1
    %s483 = scalar_lea.sflag [#allocation6], 1
    %484 = vsyncpa %s483, 1
    %485 = vsyncpa [#allocation9], 1
    %s486 = scalar_lea.sflag [#allocation9], 1
    %487 = vsyncpa %s486, 1
    %488 = vsyncpa [#allocation7], 1
    %s489 = scalar_lea.sflag [#allocation7], 1
    %490 = vsyncpa %s489, 1

</llo_original>
